<compile_context>
chip_gen: v6e
topology: v6e:2x2x1
jax: 0.10.0
libtpu: 0.0.40
codegen_flags: <defaults>
</compile_context>

<pallas_src>
import jax
import jax.numpy as jnp
from jax.experimental import pallas as pl
from jax.experimental.pallas import tpu as pltpu

IN_F = 2      # dense1 in_features
HID_F = 2     # dense1 out_features / dense2 in_features
OUT_F = 1     # dense2 out_features

_LANE = 128                 # TPU lane width
_TILE_MULT = 1024           # tile // 128 must be a multiple of 8 sublanes
_MAX_TILE = 1024 * 1024     # ~24 MB double-buffered -> safe on v7x's 64 MiB VMEM
_VMEM_LIMIT = 32 * 1024 * 1024


def _round_up(n, m):
    return ((n + m - 1) // m) * m


def _round_down(n, m):
    return (n // m) * m


def mlp_kernel(params_ref, x_ref, o_ref):
    # params_ref: SMEM (9,) f32
    #   [w1_00, w1_01, w1_10, w1_11, b1_0, b1_1, w2_00, w2_01, b2_0]
    # x_ref: VMEM (IN_F, tile//128, 128)  -- batch on (sublane, lane), dense vregs
    # o_ref: VMEM (tile//128, 128)        -- dense, unmasked stores
    w1_00 = params_ref[0]
    w1_01 = params_ref[1]
    w1_10 = params_ref[2]
    w1_11 = params_ref[3]
    b1_0 = params_ref[4]
    b1_1 = params_ref[5]
    w2_00 = params_ref[6]
    w2_01 = params_ref[7]
    b2_0 = params_ref[8]

    x0 = x_ref[0]               # (tile//128, 128)
    x1 = x_ref[1]               # (tile//128, 128)

    # dense1 + tanh  (VPU broadcast-FMAs + EUP tanh; no MXU)
    h0 = jnp.tanh(w1_00 * x0 + w1_01 * x1 + b1_0)
    h1 = jnp.tanh(w1_10 * x0 + w1_11 * x1 + b1_1)

    # dense2
    o_ref[...] = w2_00 * h0 + w2_01 * h1 + b2_0


def nn_forward(x, w1, b1, w2, b2, *, tile_b=512 * 1024):
    """Forward pass of NN.

    x: [B, 2] (PyTorch layout) or [2, B] (pre-transposed, skips a transpose pass).
    Params in PyTorch layout (w: [out, in], b: [out]).  Returns [B] float32.
    """
    assert x.ndim == 2 and (x.shape[0] == IN_F or x.shape[1] == IN_F), x.shape

    # Accept a pre-transposed (2, B) input to avoid the wrapper-side HBM
    # transpose pass; otherwise transpose the natural (B, 2) layout.
    if x.shape[0] == IN_F and x.shape[1] != IN_F:
        xt = x
    else:
        xt = x.T
    xt = xt.astype(jnp.float32)                     # (IN_F, B)
    B = xt.shape[1]

    # --- Tile legalization -------------------------------------------------
    # Multiple of 1024 so block rows are a multiple of 8 sublanes; capped so
    # the double-buffered footprint (~24 * tile bytes) fits v7x VMEM.
    tile = max(_TILE_MULT, _round_down(int(tile_b), _TILE_MULT))
    tile = min(tile, _MAX_TILE)
    bp_min = _round_up(B, _TILE_MULT)
    tile = min(tile, bp_min)
    # Keep >= 2 grid steps when the batch allows so the ("parallel",) axis can
    # be split across v7x's two TensorCores and DMA/compute still overlap.
    if bp_min >= 2 * _TILE_MULT:
        tile = min(tile, max(_TILE_MULT, _round_down(bp_min // 2, _TILE_MULT)))
    bp = _round_up(B, tile)

    # Pad only when the batch is ragged w.r.t. the tile.
    if bp != B:
        xt = jnp.pad(xt, ((0, 0), (0, bp - B)))

    # Free, contiguous reshape: (IN_F, bp) -> (IN_F, bp//128, 128).
    x3 = xt.reshape(IN_F, bp // _LANE, _LANE)
    rows = tile // _LANE                            # multiple of 8

    # Pack the 9 scalars into one SMEM-resident vector (row-major PyTorch layout).
    params = jnp.concatenate(
        [w1.reshape(-1), b1.reshape(-1), w2.reshape(-1), b2.reshape(-1)]
    ).astype(jnp.float32)                           # (9,)

    out = pl.pallas_call(
        mlp_kernel,
        out_shape=jax.ShapeDtypeStruct((bp // _LANE, _LANE), jnp.float32),
        grid=(bp // tile,),
        in_specs=[
            pl.BlockSpec(memory_space=pltpu.MemorySpace.SMEM),      # params
            pl.BlockSpec((IN_F, rows, _LANE), lambda i: (0, i, 0)),  # x slab
        ],
        out_specs=pl.BlockSpec((rows, _LANE), lambda i: (i, 0)),
        compiler_params=pltpu.CompilerParams(
            dimension_semantics=("parallel",),
            vmem_limit_bytes=_VMEM_LIMIT,
        ),
    )(params, x3)

    y = out.reshape(bp)                             # free reshape
    # torch.squeeze on [B, 1] -> [B]; slice padding only when it exists.
    return y if bp == B else y[:B]


def init_params(key):
    """Deterministic init mimicking nn.Linear default (uniform +/- 1/sqrt(fan_in))."""
    k1, k2, k3, k4 = jax.random.split(key, 4)
    bound1 = 1.0 / jnp.sqrt(IN_F)
    bound2 = 1.0 / jnp.sqrt(HID_F)
    w1 = jax.random.uniform(k1, (HID_F, IN_F), jnp.float32, -bound1, bound1)
    b1 = jax.random.uniform(k2, (HID_F,), jnp.float32, -bound1, bound1)
    w2 = jax.random.uniform(k3, (OUT_F, HID_F), jnp.float32, -bound2, bound2)
    b2 = jax.random.uniform(k4, (OUT_F,), jnp.float32, -bound2, bound2)
    return w1, b1, w2, b2


def _ref_forward(x, w1, b1, w2, b2):
    return jnp.squeeze(jnp.tanh(x @ w1.T + b1) @ w2.T + b2, axis=-1)


if __name__ == "__main__":
    key = jax.random.PRNGKey(0)
    k_x, k_p = jax.random.split(key)
    w1, b1, w2, b2 = init_params(k_p)

    # 1) Small batch (single grid step after padding to one 1024-element tile).
    B = 8
    x = jax.random.normal(k_x, (B, IN_F), dtype=jnp.float32)
    y = jax.block_until_ready(nn_forward(x, w1, b1, w2, b2))
    y_ref = _ref_forward(x, w1, b1, w2, b2)
    assert y.shape == (B,)
    assert jnp.allclose(y, y_ref, atol=1e-5), (y, y_ref)

    # 2) Exact multi-tile batch: grid = 2, no pad, no tail slice.
    B2 = 2048
    x2 = jax.random.normal(k_x, (B2, IN_F), dtype=jnp.float32)
    y2 = jax.block_until_ready(nn_forward(x2, w1, b1, w2, b2, tile_b=1024))
    y2_ref = _ref_forward(x2, w1, b1, w2, b2)
    assert y2.shape == (B2,)
    assert jnp.allclose(y2, y2_ref, atol=1e-5), (y2, y2_ref)

    # 2b) Same batch handed over pre-transposed (2, B): skips the transpose pass.
    y2t = jax.block_until_ready(nn_forward(x2.T, w1, b1, w2, b2, tile_b=1024))
    assert jnp.allclose(y2t, y2_ref, atol=1e-5)

    # 3) Ragged batch: exercises pad + tail-slice path and the >=2-step grid.
    B3 = 1500
    x3 = jax.random.normal(k_x, (B3, IN_F), dtype=jnp.float32)
    y3 = jax.block_until_ready(nn_forward(x3, w1, b1, w2, b2))
    y3_ref = _ref_forward(x3, w1, b1, w2, b2)
    assert y3.shape == (B3,)
    assert jnp.allclose(y3, y3_ref, atol=1e-5), (y3, y3_ref)

    print("KERNEL_OK")
</pallas_src>

<mosaic_0001>
module attributes {stable_mosaic.version = 11 : i64} {
  func.func @mlp_kernel(%arg0: i32, %arg1: memref<9xf32, #tpu.memory_space<smem>>, %arg2: memref<2x8x128xf32, #tpu.memory_space<vmem>>, %arg3: memref<8x128xf32, #tpu.memory_space<vmem>>) attributes {dimension_semantics = [#tpu.dimension_semantics<parallel>], iteration_bounds = array<i64: 1>, scalar_prefetch = 0 : i64, scratch_operands = 0 : i64, tpu.core_type = #tpu.core_type<tc>, window_params = [{transform_indices = @transform_0, window_bounds = array<i64: 9>}, {transform_indices = @transform_1, window_bounds = array<i64: 2, 8, 128>}, {transform_indices = @transform_2, window_bounds = array<i64: 8, 128>}]} {
    %c0 = arith.constant 0 : index
    %0 = memref.load %arg1[%c0] : memref<9xf32, #tpu.memory_space<smem>>
    %c1 = arith.constant 1 : index
    %1 = memref.load %arg1[%c1] : memref<9xf32, #tpu.memory_space<smem>>
    %c2 = arith.constant 2 : index
    %2 = memref.load %arg1[%c2] : memref<9xf32, #tpu.memory_space<smem>>
    %c3 = arith.constant 3 : index
    %3 = memref.load %arg1[%c3] : memref<9xf32, #tpu.memory_space<smem>>
    %c4 = arith.constant 4 : index
    %4 = memref.load %arg1[%c4] : memref<9xf32, #tpu.memory_space<smem>>
    %c5 = arith.constant 5 : index
    %5 = memref.load %arg1[%c5] : memref<9xf32, #tpu.memory_space<smem>>
    %c6 = arith.constant 6 : index
    %6 = memref.load %arg1[%c6] : memref<9xf32, #tpu.memory_space<smem>>
    %c7 = arith.constant 7 : index
    %7 = memref.load %arg1[%c7] : memref<9xf32, #tpu.memory_space<smem>>
    %c8 = arith.constant 8 : index
    %8 = memref.load %arg1[%c8] : memref<9xf32, #tpu.memory_space<smem>>
    %c0_0 = arith.constant 0 : index
    %c0_1 = arith.constant 0 : index
    %c0_2 = arith.constant 0 : index
    %9 = vector.load %arg2[%c0_0, %c0_1, %c0_2] : memref<2x8x128xf32, #tpu.memory_space<vmem>>, vector<1x8x128xf32>
    %10 = vector.shape_cast %9 : vector<1x8x128xf32> to vector<8x128xf32>
    %c1_3 = arith.constant 1 : index
    %c0_4 = arith.constant 0 : index
    %c0_5 = arith.constant 0 : index
    %11 = vector.load %arg2[%c1_3, %c0_4, %c0_5] : memref<2x8x128xf32, #tpu.memory_space<vmem>>, vector<1x8x128xf32>
    %12 = vector.shape_cast %11 : vector<1x8x128xf32> to vector<8x128xf32>
    %13 = vector.broadcast %0 : f32 to vector<8x128xf32>
    %14 = arith.mulf %13, %10 : vector<8x128xf32>
    %15 = vector.broadcast %1 : f32 to vector<8x128xf32>
    %16 = arith.mulf %15, %12 : vector<8x128xf32>
    %17 = arith.addf %14, %16 : vector<8x128xf32>
    %18 = vector.broadcast %4 : f32 to vector<8x128xf32>
    %19 = arith.addf %17, %18 : vector<8x128xf32>
    %20 = math.tanh %19 : vector<8x128xf32>
    %21 = vector.broadcast %2 : f32 to vector<8x128xf32>
    %22 = arith.mulf %21, %10 : vector<8x128xf32>
    %23 = vector.broadcast %3 : f32 to vector<8x128xf32>
    %24 = arith.mulf %23, %12 : vector<8x128xf32>
    %25 = arith.addf %22, %24 : vector<8x128xf32>
    %26 = vector.broadcast %5 : f32 to vector<8x128xf32>
    %27 = arith.addf %25, %26 : vector<8x128xf32>
    %28 = math.tanh %27 : vector<8x128xf32>
    %29 = vector.broadcast %6 : f32 to vector<8x128xf32>
    %30 = arith.mulf %29, %20 : vector<8x128xf32>
    %31 = vector.broadcast %7 : f32 to vector<8x128xf32>
    %32 = arith.mulf %31, %28 : vector<8x128xf32>
    %33 = arith.addf %30, %32 : vector<8x128xf32>
    %34 = vector.broadcast %8 : f32 to vector<8x128xf32>
    %35 = arith.addf %33, %34 : vector<8x128xf32>
    %c0_6 = arith.constant 0 : index
    %c0_7 = arith.constant 0 : index
    %36 = vector.load %arg3[%c0_6, %c0_7] : memref<8x128xf32, #tpu.memory_space<vmem>>, vector<8x128xf32>
    tpu.vector_store %arg3[%c0_6, %c0_7], %35 {strides = array<i32>} : memref<8x128xf32, #tpu.memory_space<vmem>>, vector<8x128xf32>,
    return
  }
  func.func @transform_0(%arg0: i32) -> i32 {
    %c0_i32 = arith.constant 0 : i32
    %c0_i32_0 = arith.constant 0 : i32
    return %c0_i32 : i32
  }
  func.func @transform_1(%arg0: i32) -> (i32, i32, i32) {
    %c0_i32 = arith.constant 0 : i32
    %c0_i32_0 = arith.constant 0 : i32
    %c0_i32_1 = arith.constant 0 : i32
    return %c0_i32, %arg0, %c0_i32_0 : i32, i32, i32
  }
  func.func @transform_2(%arg0: i32) -> (i32, i32) {
    %c0_i32 = arith.constant 0 : i32
    %c0_i32_0 = arith.constant 0 : i32
    return %arg0, %c0_i32 : i32, i32
  }
}

</mosaic_0001>

<llo_original>
// kernel: tpu_custom_call.1
$region0: #{tpu_custom_call.1}
  #allocation0 [shape = 'u32[]', space=smem, size = 0x4, offset = 0x4, fixed_abs, tag = 'smem constant byte address 0x4 - core index']
  #allocation1 [shape = 'u32[144,128]{1,0:T(1,128)}', space=vmem, size = 0x12000, scoped, tag = 'internal scratch']
  %s0 = inlined_call_operand.hbm [shape: f32[9], index: 0, kind: input, shape index: {}]
  %s1 = inlined_call_operand.hbm [shape: f32[2,8,128], index: 1, kind: input, shape index: {}]
  %s2 = inlined_call_operand.hbm [shape: f32[8,128], index: 2, kind: output, shape index: {}]
  %s3 = sld [smem:[#allocation0]]
  $region26: #{tpu_custom_call.1} parent=0
    _
  %s5 = ssub.s32 1, %s3
  %s6 = scalar_select 0, %s5, %s3
  $region1: #{tpu_custom_call.1} parent=0
    #allocation2 [shape = 'u8[512]{0}', space=smem, size = 0x200, scoped, tag = 'input window, operand 0, single buffered']
    #allocation3 [shape = 's32[1]{0}', space=sflag, size = 0x4, scoped, tag = 'scoped memory for tpu_custom_call.1']
    #allocation4 [shape = 's32[1]{0}', space=sflag, size = 0x4, scoped, tag = 'scoped memory for tpu_custom_call.1']
    #allocation5 [shape = 's32[1]{0}', space=sflag, size = 0x4, scoped, tag = 'scoped memory for tpu_custom_call.1']
    #allocation6 [shape = 'u8[8192]{0}', space=vmem, size = 0x2000, scoped, tag = 'input window, operand 1, single buffered']
    #allocation7 [shape = 'u8[4096]{0}', space=vmem, size = 0x1000, scoped, tag = 'output window, operand 0, single buffered']
    %7 = vsyncpa [#allocation5], 0
    %8 = vsyncpa [#allocation3], 0
    %9 = vsyncpa [#allocation4], 0
    // Predicated region
    $region2: #{tpu_custom_call.1} parent=1 // pred_check
      _
    $region3: #{tpu_custom_call.1} parent=1 // pred_check_branch
      %11 = sbr.rel (0) target = $region5
    $region4: #{tpu_custom_call.1} parent=1 // pred_region
      %s13 = ssub.s32 16, 16
      %14 = vsyncadd [#allocation5], %s13
      %17 = dma.hbm_to_smem %s0, 16, [#allocation2], [#allocation5]
    $region5: #{tpu_custom_call.1} parent=1 // pred_fallthru
      _
    // Predicated region
    $region6: #{tpu_custom_call.1} parent=1 // pred_check
      _
    $region7: #{tpu_custom_call.1} parent=1 // pred_check_branch
      %19 = sbr.rel (0) target = $region9
    $region8: #{tpu_custom_call.1} parent=1 // pred_region
      %s21 = ssub.s32 256, 256
      %22 = vsyncadd [#allocation3], %s21
      %s23 = sshll.u32 [#allocation6], 4
      %s24 = int_to_ptr.vmem [resolvable:$true] %s23
      %29 = dma.hbm_to_vmem [thread:$0]  %s1, 256, %s24, [#allocation3], 128, 128, 8
    $region9: #{tpu_custom_call.1} parent=1 // pred_fallthru
      _
    // Predicated region
    $region10: #{tpu_custom_call.1} parent=1 // pred_check
      _
    $region11: #{tpu_custom_call.1} parent=1 // pred_check_branch
      %31 = sbr.rel (0) target = $region13
    $region12: #{tpu_custom_call.1} parent=1 // pred_region
      %32 = dma.done [#allocation5], 16
    $region13: #{tpu_custom_call.1} parent=1 // pred_fallthru
      _
    // Predicated region
    $region14: #{tpu_custom_call.1} parent=1 // pred_check
      _
    $region15: #{tpu_custom_call.1} parent=1 // pred_check_branch
      %34 = sbr.rel (0) target = $region17
    $region16: #{tpu_custom_call.1} parent=1 // pred_region
      %35 = dma.done [#allocation3], 256
    $region17: #{tpu_custom_call.1} parent=1 // pred_fallthru
      _
    %36 = sfence
    %s37 = sld [smem:[#allocation2]]
    %s38 = sld [smem:[#allocation2 + $0x1]]
    %s39 = sld [smem:[#allocation2 + $0x2]]
    %s40 = sld [smem:[#allocation2 + $0x3]]
    %s41 = sld [smem:[#allocation2 + $0x4]]
    %s42 = sld [smem:[#allocation2 + $0x5]]
    %s43 = sld [smem:[#allocation2 + $0x6]]
    %s44 = sld [smem:[#allocation2 + $0x7]]
    %s45 = sld [smem:[#allocation2 + $0x8]]
    %v46 = vld [vmem:[#allocation6] sm:$0xff]
    %s47 = scalar_lea.vmem [#allocation6], 8
    %v48 = vld [vmem:[%s47] sm:$0xff]
    %v49 = vstv %s37
    %v50 = vmul.f32 %v49, %v46
    %v51 = vstv %s38
    %v52 = vmul.f32 %v51, %v48
    %v53 = vadd.f32 %v50, %v52
    %v54 = vstv %s41
    %v55 = vadd.f32 %v53, %v54
    %v56 = vtanh.pop %v55
    %v57 = vstv %s39
    %v58 = vmul.f32 %v57, %v46
    %v59 = vstv %s40
    %v60 = vmul.f32 %v59, %v48
    %v61 = vadd.f32 %v58, %v60
    %v62 = vstv %s42
    %v63 = vadd.f32 %v61, %v62
    %v64 = vtanh.pop %v63
    %v65 = vstv %s43
    %v66 = vmul.f32 %v65, %v56
    %v67 = vstv %s44
    %v68 = vmul.f32 %v67, %v64
    %v69 = vadd.f32 %v66, %v68
    %v70 = vstv %s45
    %v71 = vadd.f32 %v69, %v70
    %72 = vst [vmem:[#allocation7] sm:$0xff] %v71
    // Predicated region
    $region18: #{tpu_custom_call.1} parent=1 // pred_check
      _
    $region19: #{tpu_custom_call.1} parent=1 // pred_check_branch
      %74 = sbr.rel (0) target = $region21
    $region20: #{tpu_custom_call.1} parent=1 // pred_region
      %s76 = ssub.s32 128, 128
      %77 = vsyncadd [#allocation4], %s76
      %s79 = sshll.u32 [#allocation7], 4
      %s80 = int_to_ptr.vmem [resolvable:$true] %s79
      %82 = dma.vmem_to_hbm [thread:$0]  %s80, 128, %s2, [#allocation4]
    $region21: #{tpu_custom_call.1} parent=1 // pred_fallthru
      _
    // Predicated region
    $region22: #{tpu_custom_call.1} parent=1 // pred_check
      _
    $region23: #{tpu_custom_call.1} parent=1 // pred_check_branch
      %84 = sbr.rel (0) target = $region25
    $region24: #{tpu_custom_call.1} parent=1 // pred_region
      %85 = dma.done [#allocation4], 128
    $region25: #{tpu_custom_call.1} parent=1 // pred_fallthru
      _
    %86 = vsyncpa [#allocation3], 1
    %87 = vsyncpa [#allocation4], 1
    %88 = vsyncpa [#allocation5], 1

</llo_original>
